<compile_context>
chip_gen: v7x
topology: tpu7x:2x2x1
jax: 0.10.0
libtpu: 0.0.40
codegen_flags: <defaults>
</compile_context>

<pallas_src>
import jax
import jax.numpy as jnp
import numpy as np
from jax.experimental import pallas as pl
from jax.experimental.pallas import tpu as pltpu


def _round_up(x, m):
    return (x + m - 1) // m * m


def _vmem_limit_bytes():
    """~75% of physical VMEM, capped at 96 MiB (v5e/v6e: 96 MiB, v7x: 48 MiB)."""
    try:
        cap = pltpu.get_tpu_info().vmem_capacity_bytes
    except Exception:
        cap = 64 * 1024 * 1024  # conservative (v7x) if query unavailable
    return min(96 * 1024 * 1024, int(cap * 3 // 4))


def _dense_kernel(x_ref, w_ref, b_ref, o_ref):
    # x_ref: (tm, tk) original dtype   w_ref: (tk, tn) compute dtype (bf16/f32)
    # b_ref: (1, tn) f32               o_ref: (tm, tn) f32, resident across k
    k = pl.program_id(2)

    @pl.when(k == 0)
    def _():
        o_ref[...] = jnp.zeros_like(o_ref)

    # Per-tile cast of the activation to the matmul dtype; f32 accumulation
    # into the resident output block (no separate acc scratch).
    o_ref[...] += jnp.dot(
        x_ref[...].astype(w_ref.dtype),
        w_ref[...],
        preferred_element_type=jnp.float32,
    )

    @pl.when(k == pl.num_programs(2) - 1)
    def _():
        # Epilogue in f32: bias broadcast over rows + ReLU, in place.
        o_ref[...] = jnp.maximum(o_ref[...] + b_ref[...], 0.0)


def dense_forward(x, weights, bias, *, compute_dtype=jnp.bfloat16,
                  tm=512, tn=512, tk=512, force_pallas=False):
    """x: [B, N, D_in], weights: [D_in, D_out], bias: [D_out] -> [B, N, D_out] (f32)."""
    B, N, D_in = x.shape
    D_out = weights.shape[1]
    M = B * N

    # Small-shape fallback: fixed pallas_call / grid-step overhead dominates
    # tiny layers; XLA's fused matmul is strictly faster there.
    if not force_pallas and 2 * M * D_in * D_out < (1 << 22):
        y = jnp.einsum("bnd,do->bno", x.astype(jnp.float32),
                       weights.astype(jnp.float32))
        return jnp.maximum(y + bias.astype(jnp.float32), 0.0)

    # Activations keep their original dtype (cast per-tile in the kernel);
    # weights/bias are small, cast once here.
    x2 = x.reshape(M, D_in)
    w = weights.astype(compute_dtype)
    b = bias.astype(jnp.float32)

    # Clamp tile sizes to the (aligned) problem size so small layers use a
    # single grid point instead of padding up to full 512 tiles.
    tm = min(tm, _round_up(M, 8))
    tn = min(tn, _round_up(D_out, 128))
    tk = min(tk, _round_up(D_in, 128))

    Mp = _round_up(M, tm)
    Kp = _round_up(D_in, tk)
    Np = _round_up(D_out, tn)

    # Zero-pad only when alignment requires it: K padding contributes 0 to the
    # reduction, M/N padding is sliced off after the call.
    if (Mp, Kp) != (M, D_in):
        x2 = jnp.pad(x2, ((0, Mp - M), (0, Kp - D_in)))
    if (Kp, Np) != (D_in, D_out):
        w = jnp.pad(w, ((0, Kp - D_in), (0, Np - D_out)))
    b2 = (jnp.pad(b, (0, Np - D_out)) if Np != D_out else b).reshape(1, Np)

    # Grid: M-tiles outermost (leading parallel axis -> v7x megacore sharding),
    # K innermost as the reduction axis.
    grid = (Mp // tm, Np // tn, Kp // tk)

    x_bytes = Mp * Kp * x2.dtype.itemsize * (Np // tn)          # x re-read per N tile
    w_bytes = Kp * Np * jnp.dtype(compute_dtype).itemsize * (Mp // tm)  # w re-read per M tile
    cost = pl.CostEstimate(
        flops=2 * Mp * Kp * Np,
        transcendentals=0,
        bytes_accessed=x_bytes + w_bytes + Np * 4 + Mp * Np * 4,
    )

    out = pl.pallas_call(
        _dense_kernel,
        out_shape=jax.ShapeDtypeStruct((Mp, Np), jnp.float32),
        grid_spec=pltpu.PrefetchScalarGridSpec(
            num_scalar_prefetch=0,
            grid=grid,
            in_specs=[
                # NOTE: if profiles show exposed DMA at large tiles, add
                # pipeline_mode=pl.Buffered(3) to the x / w specs (check the
                # v7x 64 MiB budget first).
                pl.BlockSpec((tm, tk), lambda i, j, k: (i, k)),   # x tile
                pl.BlockSpec((tk, tn), lambda i, j, k: (k, j)),   # weight tile
                pl.BlockSpec((1, tn), lambda i, j, k: (0, j)),    # bias tile
            ],
            out_specs=pl.BlockSpec((tm, tn), lambda i, j, k: (i, j)),
        ),
        compiler_params=pltpu.CompilerParams(
            dimension_semantics=("parallel", "parallel", "arbitrary"),
            vmem_limit_bytes=_vmem_limit_bytes(),
        ),
        cost_estimate=cost,
    )(x2, w, b2)

    return out[:M, :D_out].reshape(B, N, D_out)


def weight_variable_glorot(key, input_dim, output_dim):
    """Glorot & Bengio (AISTATS 2010) uniform init, matching the torch code."""
    init_range = np.sqrt(6.0 / (input_dim + output_dim))
    return jax.random.uniform(
        key, (input_dim, output_dim), dtype=jnp.float32,
        minval=-init_range, maxval=init_range,
    )


if __name__ == "__main__":
    # Small shapes consistent with the module's forward:
    # batch B=2 matrices of shape [N=8, input_dim=32], output_dim=32.
    B, N, D_in, D_out = 2, 8, 32, 32

    key = jax.random.PRNGKey(0)
    k_x, k_w = jax.random.split(key)

    x = jax.random.normal(k_x, (B, N, D_in), dtype=jnp.float32)
    weights = weight_variable_glorot(k_w, D_in, D_out)
    bias = jnp.zeros((D_out,), dtype=jnp.float32)  # torch.zeros([output_dim])

    # Pure-JAX reference (same math as torch.mm per batch + bias + relu).
    ref = jnp.maximum(jnp.einsum("bnd,do->bno", x, weights) + bias, 0.0)

    # Exact-precision path: f32 matmul through the Pallas kernel.
    out_f32 = dense_forward(x, weights, bias,
                            compute_dtype=jnp.float32, force_pallas=True)
    out_f32 = jax.block_until_ready(out_f32)
    np.testing.assert_allclose(np.asarray(out_f32), np.asarray(ref),
                               rtol=1e-5, atol=1e-5)

    # Default fast path: bf16 MXU matmul with f32 accumulation (looser tol).
    out_bf16 = dense_forward(x, weights, bias, force_pallas=True)
    out_bf16 = jax.block_until_ready(out_bf16)
    np.testing.assert_allclose(np.asarray(out_bf16), np.asarray(ref),
                               rtol=2e-2, atol=2e-2)

    print("KERNEL_OK")
</pallas_src>

<mosaic_0001>
module attributes {stable_mosaic.version = 11 : i64} {
  func.func @_dense_kernel(%arg0: i32, %arg1: i32, %arg2: i32, %arg3: memref<16x128xf32, #tpu.memory_space<vmem>>, %arg4: memref<128x128xf32, #tpu.memory_space<vmem>>, %arg5: memref<1x128xf32, #tpu.memory_space<vmem>>, %arg6: memref<16x128xf32, #tpu.memory_space<vmem>>) attributes {dimension_semantics = [#tpu.dimension_semantics<parallel>, #tpu.dimension_semantics<parallel>, #tpu.dimension_semantics<arbitrary>], iteration_bounds = array<i64: 1, 1, 1>, scalar_prefetch = 0 : i64, scratch_operands = 0 : i64, tpu.core_type = #tpu.core_type<tc>, window_params = [{transform_indices = @transform_0, window_bounds = array<i64: 16, 128>}, {transform_indices = @transform_1, window_bounds = array<i64: 128, 128>}, {transform_indices = @transform_2, window_bounds = array<i64: 1, 128>}, {transform_indices = @transform_3, window_bounds = array<i64: 16, 128>}]} {
    %c0_i32 = arith.constant 0 : i32
    %0 = arith.cmpi eq, %arg2, %c0_i32 : i32
    %1 = arith.extui %0 : i1 to i32
    %c0_i32_0 = arith.constant 0 : i32
    %2 = arith.cmpi ne, %1, %c0_i32_0 : i32
    scf.if %2 {
      %cst_10 = arith.constant 0.000000e+00 : f32
      %12 = vector.broadcast %cst_10 : f32 to vector<16x128xf32>
      %c0_11 = arith.constant 0 : index
      %c0_12 = arith.constant 0 : index
      %13 = vector.load %arg6[%c0_11, %c0_12] : memref<16x128xf32, #tpu.memory_space<vmem>>, vector<16x128xf32>
      tpu.vector_store %arg6[%c0_11, %c0_12], %12 {strides = array<i32>} : memref<16x128xf32, #tpu.memory_space<vmem>>, vector<16x128xf32>,
    } else {
    }
    %c0 = arith.constant 0 : index
    %c0_1 = arith.constant 0 : index
    %3 = vector.load %arg6[%c0, %c0_1] : memref<16x128xf32, #tpu.memory_space<vmem>>, vector<16x128xf32>
    %c0_2 = arith.constant 0 : index
    %c0_3 = arith.constant 0 : index
    %4 = vector.load %arg3[%c0_2, %c0_3] : memref<16x128xf32, #tpu.memory_space<vmem>>, vector<16x128xf32>
    %c0_4 = arith.constant 0 : index
    %c0_5 = arith.constant 0 : index
    %5 = vector.load %arg4[%c0_4, %c0_5] : memref<128x128xf32, #tpu.memory_space<vmem>>, vector<128x128xf32>
    %cst = arith.constant dense<0.000000e+00> : vector<16x128xf32>
    %6 = tpu.matmul %4, %5, %cst {dimension_numbers = #tpu.dot_dimension_numbers<[1], [0], [0], [1], [0, 0, 1, 1], [], []>} : vector<16x128xf32>, vector<128x128xf32>, vector<16x128xf32> -> vector<16x128xf32>
    %7 = arith.addf %3, %6 : vector<16x128xf32>
    %c0_6 = arith.constant 0 : index
    %c0_7 = arith.constant 0 : index
    %8 = vector.load %arg6[%c0_6, %c0_7] : memref<16x128xf32, #tpu.memory_space<vmem>>, vector<16x128xf32>
    tpu.vector_store %arg6[%c0_6, %c0_7], %7 {strides = array<i32>} : memref<16x128xf32, #tpu.memory_space<vmem>>, vector<16x128xf32>,
    %c0_i32_8 = arith.constant 0 : i32
    %9 = arith.cmpi eq, %arg2, %c0_i32_8 : i32
    %10 = arith.extui %9 : i1 to i32
    %c0_i32_9 = arith.constant 0 : i32
    %11 = arith.cmpi ne, %10, %c0_i32_9 : i32
    scf.if %11 {
      %c0_10 = arith.constant 0 : index
      %c0_11 = arith.constant 0 : index
      %12 = vector.load %arg6[%c0_10, %c0_11] : memref<16x128xf32, #tpu.memory_space<vmem>>, vector<16x128xf32>
      %c0_12 = arith.constant 0 : index
      %c0_13 = arith.constant 0 : index
      %13 = vector.load %arg5[%c0_12, %c0_13] : memref<1x128xf32, #tpu.memory_space<vmem>>, vector<1x128xf32>
      %14 = vector.broadcast %13 : vector<1x128xf32> to vector<16x128xf32>
      %15 = arith.addf %12, %14 : vector<16x128xf32>
      %cst_14 = arith.constant 0.000000e+00 : f32
      %16 = vector.broadcast %cst_14 : f32 to vector<16x128xf32>
      %17 = arith.maximumf %15, %16 : vector<16x128xf32>
      %c0_15 = arith.constant 0 : index
      %c0_16 = arith.constant 0 : index
      %18 = vector.load %arg6[%c0_15, %c0_16] : memref<16x128xf32, #tpu.memory_space<vmem>>, vector<16x128xf32>
      tpu.vector_store %arg6[%c0_15, %c0_16], %17 {strides = array<i32>} : memref<16x128xf32, #tpu.memory_space<vmem>>, vector<16x128xf32>,
    } else {
    }
    return
  }
  func.func @transform_0(%arg0: i32, %arg1: i32, %arg2: i32) -> (i32, i32) {
    %c0_i32 = arith.constant 0 : i32
    return %arg0, %arg2 : i32, i32
  }
  func.func @transform_1(%arg0: i32, %arg1: i32, %arg2: i32) -> (i32, i32) {
    %c0_i32 = arith.constant 0 : i32
    return %arg2, %arg1 : i32, i32
  }
  func.func @transform_2(%arg0: i32, %arg1: i32, %arg2: i32) -> (i32, i32) {
    %c0_i32 = arith.constant 0 : i32
    %c0_i32_0 = arith.constant 0 : i32
    return %c0_i32, %arg1 : i32, i32
  }
  func.func @transform_3(%arg0: i32, %arg1: i32, %arg2: i32) -> (i32, i32) {
    %c0_i32 = arith.constant 0 : i32
    return %arg0, %arg1 : i32, i32
  }
}

</mosaic_0001>

<llo_original>
// kernel: tpu_custom_call.1
$region0: #{tpu_custom_call.1}
  #allocation0 [shape = 'u32[]', space=smem, size = 0x4, offset = 0x4, fixed_abs, tag = 'smem constant byte address 0x4 - core index']
  #allocation1 [shape = 'u32[144,128]{1,0:T(1,128)}', space=vmem, size = 0x12000, scoped, tag = 'internal scratch']
  %s0 = inlined_call_operand.hbm [shape: f32[16,128], index: 0, kind: input, shape index: {}]
  %s1 = inlined_call_operand.hbm [shape: f32[128,128], index: 1, kind: input, shape index: {}]
  %s2 = inlined_call_operand.vmem [shape: f32[1,128], index: 2, kind: input, shape index: {}]
  %s3 = inlined_call_operand.hbm [shape: f32[16,128], index: 3, kind: output, shape index: {}]
  %s4 = sld [smem:[#allocation0]]
  $region38: #{tpu_custom_call.1} parent=0
    _
  %s6 = ssub.s32 1, %s4
  %s7 = scalar_select 0, %s6, %s4
  $region1: #{tpu_custom_call.1} parent=0
    #allocation2 [shape = 'u8[8192]{0}', space=vmem, size = 0x2000, scoped, tag = 'input window, operand 0, single buffered']
    #allocation3 [shape = 's32[1]{0}', space=sflag, size = 0x4, scoped, tag = 'scoped memory for tpu_custom_call.1']
    #allocation4 [shape = 's32[1]{0}', space=sflag, size = 0x4, scoped, tag = 'scoped memory for tpu_custom_call.1']
    #allocation5 [shape = 'u8[65536]{0}', space=vmem, size = 0x10000, scoped, tag = 'input window, operand 1, single buffered']
    #allocation6 [shape = 's32[1]{0}', space=sflag, size = 0x4, scoped, tag = 'scoped memory for tpu_custom_call.1']
    #allocation7 [shape = 'u8[8192]{0}', space=vmem, size = 0x2000, scoped, tag = 'output window, operand 0, single buffered']
    %8 = vsyncpa [#allocation3], 0
    %9 = vsyncpa [#allocation6], 0
    %10 = vsyncpa [#allocation4], 0
    // Predicated region
    $region2: #{tpu_custom_call.1} parent=1 // pred_check
      _
    $region3: #{tpu_custom_call.1} parent=1 // pred_check_branch
      %12 = sbr.rel (0) target = $region5
    $region4: #{tpu_custom_call.1} parent=1 // pred_region
      %s14 = ssub.s32 256, 256
      %15 = vsyncadd [#allocation3], %s14
      %s16 = sshll.u32 [#allocation2], 4
      %s17 = int_to_ptr.vmem [resolvable:$true] %s16
      %22 = dma.hbm_to_vmem [thread:$0]  %s0, 256, %s17, [#allocation3], 128, 128, 8
    $region5: #{tpu_custom_call.1} parent=1 // pred_fallthru
      _
    // Predicated region
    $region6: #{tpu_custom_call.1} parent=1 // pred_check
      _
    $region7: #{tpu_custom_call.1} parent=1 // pred_check_branch
      %24 = sbr.rel (0) target = $region9
    $region8: #{tpu_custom_call.1} parent=1 // pred_region
      %s26 = ssub.s32 2048, 2048
      %27 = vsyncadd [#allocation6], %s26
      %s28 = sshll.u32 [#allocation5], 4
      %s29 = int_to_ptr.vmem [resolvable:$true] %s28
      %34 = dma.hbm_to_vmem [thread:$0]  %s1, 2048, %s29, [#allocation6], 128, 128, 8
    $region9: #{tpu_custom_call.1} parent=1 // pred_fallthru
      _
    // Predicated region
    $region10: #{tpu_custom_call.1} parent=1 // pred_check
      _
    $region11: #{tpu_custom_call.1} parent=1 // pred_check_branch
      %36 = sbr.rel (0) target = $region13
    $region12: #{tpu_custom_call.1} parent=1 // pred_region
      _
    $region13: #{tpu_custom_call.1} parent=1 // pred_fallthru
      _
    // Predicated region
    $region14: #{tpu_custom_call.1} parent=1 // pred_check
      _
    $region15: #{tpu_custom_call.1} parent=1 // pred_check_branch
      %38 = sbr.rel (0) target = $region17
    $region16: #{tpu_custom_call.1} parent=1 // pred_region
      %39 = dma.done [#allocation3], 256
    $region17: #{tpu_custom_call.1} parent=1 // pred_fallthru
      _
    // Predicated region
    $region18: #{tpu_custom_call.1} parent=1 // pred_check
      _
    $region19: #{tpu_custom_call.1} parent=1 // pred_check_branch
      %41 = sbr.rel (0) target = $region21
    $region20: #{tpu_custom_call.1} parent=1 // pred_region
      %42 = dma.done [#allocation6], 2048
    $region21: #{tpu_custom_call.1} parent=1 // pred_fallthru
      _
    %p43 = scmp.eq.s32.totalorder 0, 0
    // Predicated region
    $region22: #{tpu_custom_call.1} parent=1 // pred_check
      %p44 = pneg %p43
    $region23: #{tpu_custom_call.1} parent=1 // pred_check_branch
      %46 = sbr.rel (%p44) target = $region25
    $region24: #{tpu_custom_call.1} parent=1 // pred_region
      %47 = vst [vmem:[#allocation7] sm:$0xff] 0.0
      %48 = vst [vmem:[#allocation7 + $0x8] sm:$0xff] 0.0
    $region25: #{tpu_custom_call.1} parent=1 // pred_fallthru
      _
    %v49 = vld [vmem:[#allocation7] sm:$0xff]
    %v50 = vld [vmem:[#allocation7 + $0x8] sm:$0xff]
    %v51 = vld [vmem:[#allocation2] sm:$0xff]
    %v52 = vld [vmem:[#allocation2 + $0x8] sm:$0xff]
    %v53 = vld [vmem:[#allocation5] sm:$0xff]
    %v54 = vld [vmem:[#allocation5 + $0x8] sm:$0xff]
    %v55 = vld [vmem:[#allocation5 + $0x10] sm:$0xff]
    %v56 = vld [vmem:[#allocation5 + $0x18] sm:$0xff]
    %v57 = vld [vmem:[#allocation5 + $0x20] sm:$0xff]
    %v58 = vld [vmem:[#allocation5 + $0x28] sm:$0xff]
    %v59 = vld [vmem:[#allocation5 + $0x30] sm:$0xff]
    %v60 = vld [vmem:[#allocation5 + $0x38] sm:$0xff]
    %v61 = vld [vmem:[#allocation5 + $0x40] sm:$0xff]
    %v62 = vld [vmem:[#allocation5 + $0x48] sm:$0xff]
    %v63 = vld [vmem:[#allocation5 + $0x50] sm:$0xff]
    %v64 = vld [vmem:[#allocation5 + $0x58] sm:$0xff]
    %v65 = vld [vmem:[#allocation5 + $0x60] sm:$0xff]
    %v66 = vld [vmem:[#allocation5 + $0x68] sm:$0xff]
    %v67 = vld [vmem:[#allocation5 + $0x70] sm:$0xff]
    %v68 = vld [vmem:[#allocation5 + $0x78] sm:$0xff]
    %69 = vmatprep.subr.mxu0 0.0
    %70 = vmatpush1.msra.mxu0 %v53
    %71 = vmatprep.subr.mxu0 0.0
    %72 = vmatpush1.msra.mxu0 %v54
    %73 = vmatprep.subr.mxu0 0.0
    %74 = vmatpush1.msra.mxu0 %v55
    %75 = vmatprep.subr.mxu0 0.0
    %76 = vmatpush1.msra.mxu0 %v56
    %77 = vmatprep.subr.mxu0 0.0
    %78 = vmatpush1.msra.mxu0 %v57
    %79 = vmatprep.subr.mxu0 0.0
    %80 = vmatpush1.msra.mxu0 %v58
    %81 = vmatprep.subr.mxu0 0.0
    %82 = vmatpush1.msra.mxu0 %v59
    %83 = vmatprep.subr.mxu0 0.0
    %84 = vmatpush1.msra.mxu0 %v60
    %85 = vmatprep.subr.mxu0 0.0
    %86 = vmatpush1.msra.mxu0 %v61
    %87 = vmatprep.subr.mxu0 0.0
    %88 = vmatpush1.msra.mxu0 %v62
    %89 = vmatprep.subr.mxu0 0.0
    %90 = vmatpush1.msra.mxu0 %v63
    %91 = vmatprep.subr.mxu0 0.0
    %92 = vmatpush1.msra.mxu0 %v64
    %93 = vmatprep.subr.mxu0 0.0
    %94 = vmatpush1.msra.mxu0 %v65
    %95 = vmatprep.subr.mxu0 0.0
    %96 = vmatpush1.msra.mxu0 %v66
    %97 = vmatprep.subr.mxu0 0.0
    %98 = vmatpush1.msra.mxu0 %v67
    %99 = vmatprep.subr.mxu0 0.0
    %100 = vmatpush1.msra.mxu0 %v68
    %101 = vmatprep.subr.mxu0 0.0
    %102 = vmatpush1.msra.mxu0 0.0
    %103 = vmatprep.subr.mxu0 0.0
    %104 = vmatpush1.msra.mxu0 0.0
    %105 = vmatprep.subr.mxu0 0.0
    %106 = vmatpush1.msra.mxu0 0.0
    %107 = vmatprep.subr.mxu0 0.0
    %108 = vmatpush1.msra.mxu0 0.0
    %109 = vmatprep.subr.mxu0 0.0
    %110 = vmatpush1.msra.mxu0 0.0
    %111 = vmatprep.subr.mxu0 0.0
    %112 = vmatpush1.msra.mxu0 0.0
    %113 = vmatprep.subr.mxu0 0.0
    %114 = vmatpush1.msra.mxu0 0.0
    %115 = vmatprep.subr.mxu0 0.0
    %116 = vmatpush1.msra.mxu0 0.0
    %117 = vmatprep.subr.mxu0 0.0
    %118 = vmatpush1.msra.mxu0 0.0
    %119 = vmatprep.subr.mxu0 0.0
    %120 = vmatpush1.msra.mxu0 0.0
    %121 = vmatprep.subr.mxu0 0.0
    %122 = vmatpush1.msra.mxu0 0.0
    %123 = vmatprep.subr.mxu0 0.0
    %124 = vmatpush1.msra.mxu0 0.0
    %125 = vmatprep.subr.mxu0 0.0
    %126 = vmatpush1.msra.mxu0 0.0
    %127 = vmatprep.subr.mxu0 0.0
    %128 = vmatpush1.msra.mxu0 0.0
    %129 = vmatprep.subr.mxu0 0.0
    %130 = vmatpush1.msra.mxu0 0.0
    %131 = vmatprep.subr.mxu0 0.0
    %132 = vmatpush1.msra.mxu0 0.0
    %133 = vmatprep.mubr.f32.mxu0 0.0
    %134 = vmatmul.mubr.f32.gmra.mrb[0].mxu0 %v51
    %v135 = vpop.f32.mrb[0].mxu0
    %v136 = vadd.f32 0.0, %v135
    %v137 = vpop.f32.mrb[0].mxu0
    %138 = vmatprep.mubr.f32.mxu0 0.0
    %139 = vmatmul.mubr.f32.gmra.mrb[0].mxu0 %v52
    %v140 = vpop.f32.mrb[0].mxu0
    %v141 = vadd.f32 0.0, %v140
    %v142 = vpop.f32.mrb[0].mxu0
    %143 = vdwg.mxu0
    %v144 = vadd.f32 %v49, %v136
    %v145 = vadd.f32 %v50, %v141
    %146 = vst [vmem:[#allocation7] sm:$0xff] %v144
    %147 = vst [vmem:[#allocation7 + $0x8] sm:$0xff] %v145
    // Predicated region
    $region26: #{tpu_custom_call.1} parent=1 // pred_check
      %p148 = pneg %p43
    $region27: #{tpu_custom_call.1} parent=1 // pred_check_branch
      %150 = sbr.rel (%p148) target = $region29
    $region28: #{tpu_custom_call.1} parent=1 // pred_region
      %v151 = vld [vmem:[#allocation7] sm:$0xff]
      %v152 = vld [vmem:[#allocation7 + $0x8] sm:$0xff]
      %v153 = vld [vmem:[%s2] sm:$0x1]
      %v155 = vlaneseq
      %v156 = vshrl.u32 %v155, 7
      %v157 = vsub.s32 0, %v156
      %v158 = vrot.slane %v153, %v157
      %v160 = vadd.f32 %v151, %v158
      %v161 = vadd.f32 %v152, %v158
      %v162 = vmax.f32 %v160, 0.0
      %v163 = vmax.f32 %v161, 0.0
      %164 = vst [vmem:[#allocation7] sm:$0xff] %v162
      %165 = vst [vmem:[#allocation7 + $0x8] sm:$0xff] %v163
    $region29: #{tpu_custom_call.1} parent=1 // pred_fallthru
      _
    // Predicated region
    $region30: #{tpu_custom_call.1} parent=1 // pred_check
      _
    $region31: #{tpu_custom_call.1} parent=1 // pred_check_branch
      %167 = sbr.rel (0) target = $region33
    $region32: #{tpu_custom_call.1} parent=1 // pred_region
      %s169 = ssub.s32 256, 256
      %170 = vsyncadd [#allocation4], %s169
      %s171 = sshll.u32 [#allocation7], 4
      %s172 = int_to_ptr.vmem [resolvable:$true] %s171
      %177 = dma.vmem_to_hbm [thread:$0]  %s172, 256, %s3, [#allocation4], 128, 128, 8
    $region33: #{tpu_custom_call.1} parent=1 // pred_fallthru
      _
    // Predicated region
    $region34: #{tpu_custom_call.1} parent=1 // pred_check
      _
    $region35: #{tpu_custom_call.1} parent=1 // pred_check_branch
      %179 = sbr.rel (0) target = $region37
    $region36: #{tpu_custom_call.1} parent=1 // pred_region
      %180 = dma.done [#allocation4], 256
    $region37: #{tpu_custom_call.1} parent=1 // pred_fallthru
      _
    %181 = vsyncpa [#allocation3], 1
    %182 = vsyncpa [#allocation6], 1
    %183 = vsyncpa [#allocation4], 1

</llo_original>
